<compile_context>
chip_gen: v7x
topology: tpu7x:2x2x1
jax: 0.10.0
libtpu: 0.0.40
codegen_flags: <defaults>
</compile_context>

<pallas_src>
import numpy as np
import jax
import jax.numpy as jnp
from jax import lax
from jax.experimental import pallas as pl
from jax.experimental.pallas import tpu as pltpu


def _ceil_to(v, m):
    return ((v + m - 1) // m) * m


def make_temporal_block_kernel(*, Cip, Cop, L, K, DIL, Bt, fused,
                               sep_downsample, im2col, compute_dtype):
    """Kernel over one batch tile: x block is (Cip, Bt*L), channel-padded."""
    lanes = Bt * L
    pow2_L = (L & (L - 1)) == 0

    def kernel(*refs):
        x_ref, w1_ref, b1_ref, w2_ref, b2_ref = refs[:5]
        idx = 5
        if sep_downsample:
            wd_ref, bd_ref = refs[idx], refs[idx + 1]
            idx += 2
        o_ref = refs[idx]
        idx += 1
        taps = refs[idx:]          # (taps1, taps2) in im2col mode, else ()

        lane = lax.broadcasted_iota(jnp.int32, (1, lanes), 1)
        pos = (lane & (L - 1)) if pow2_L else (lane % L)

        def causal(src, s):
            # Shift right by s within each length-L batch segment with a zero
            # causal prefix.  One full-width roll; the wrap-around only lands
            # on the first s lanes of each segment, which are masked to zero,
            # so the result is exact.
            if s == 0:
                return src
            if src.dtype.itemsize == 4:
                rolled = pltpu.roll(src, shift=s, axis=1)
            else:
                # Lane rolls are done in 32-bit; upcast for the roll only.
                rolled = pltpu.roll(src.astype(jnp.float32), shift=s, axis=1)
            return jnp.where(pos < s, 0.0, rolled).astype(src.dtype)

        def conv(src, w, b_ref, taps_ref, Cs):
            """Causal dilated conv of src:(Cs, lanes) with stacked w:(rows,K*Cs)."""
            if im2col:
                for t in range(K):                       # K aligned full stores
                    taps_ref[t * Cs:(t + 1) * Cs, :] = causal(src, (K - 1 - t) * DIL)
                acc = jnp.dot(w, taps_ref[...],
                              preferred_element_type=jnp.float32)
            else:                                        # per-tap accumulation
                acc = jnp.dot(w[:, (K - 1) * Cs:], src,   # s = 0 tap
                              preferred_element_type=jnp.float32)
                for t in range(K - 1):
                    acc += jnp.dot(w[:, t * Cs:(t + 1) * Cs],
                                   causal(src, (K - 1 - t) * DIL),
                                   preferred_element_type=jnp.float32)
            return acc + b_ref[...]

        x = x_ref[...]                                   # (Cip, lanes)

        # ---- conv1 (+ optionally fused 1x1 downsample), bias, ReLU ----------
        y1 = conv(x, w1_ref[...], b1_ref, taps[0] if im2col else None, Cip)
        if fused:
            o1 = jnp.maximum(y1[:Cop, :], 0.0)
            res = y1[Cop:, :]                            # downsample rows
        else:
            o1 = jnp.maximum(y1, 0.0)
            if sep_downsample:
                res = jnp.dot(wd_ref[...], x,
                              preferred_element_type=jnp.float32) + bd_ref[...]
            else:
                res = x.astype(jnp.float32)              # identity residual
        # TODO(synk): dropout1 is eval-mode identity.

        # ---- conv2, bias, ReLU ----------------------------------------------
        o1c = o1.astype(compute_dtype)
        o2 = jnp.maximum(
            conv(o1c, w2_ref[...], b2_ref, taps[1] if im2col else None, Cop),
            0.0)
        # TODO(synk): dropout2 is eval-mode identity.

        # ---- residual add + final ReLU --------------------------------------
        o_ref[...] = jnp.maximum(o2 + res, 0.0).astype(o_ref.dtype)

    return kernel


def temporal_block_forward(x, w1, b1, w2, b2, wd=None, bd=None, *,
                           kernel_size, dilation,
                           compute_dtype=jnp.float32,
                           batch_tile=None, im2col=None):
    """x: (B, C_in, L) f32 -> (B, C_out, L) f32.

    wd/bd = None -> identity residual (requires C_in == C_out), matching the
    PyTorch module's `downsample=None` path.
    """
    B, C_in, L = x.shape
    C_out = w1.shape[0]
    K, DIL = kernel_size, dilation
    PAD = (K - 1) * DIL
    assert PAD < L, "(kernel_size-1)*dilation must be < sequence length"

    identity = wd is None
    if identity:
        assert C_in == C_out, "identity residual requires C_in == C_out"

    itemsize = jnp.dtype(compute_dtype).itemsize
    sub = 8 if itemsize == 4 else 16                     # sublane multiple
    Cip = _ceil_to(C_in, sub)
    Cop = _ceil_to(C_out, sub)

    if im2col is None:
        # Per-tap contraction depth is already MXU-efficient once C_pad >= 128;
        # below that, the single im2col dot (depth K*C_pad) wins.
        im2col = Cip < 128
    fused = (not identity) and (2 * Cop <= 128)
    sep = (not identity) and (not fused)

    # ---- per-generation VMEM budget & explicit scoped limit -----------------
    try:
        vmem_cap = pltpu.get_tpu_info().vmem_capacity_bytes
    except Exception:
        vmem_cap = 64 * 1024 * 1024                      # conservative (v7x)
    vmem_limit = min(int(vmem_cap * 0.85), 112 * 1024 * 1024)
    budget = int(vmem_limit * 0.9)

    def working_set(bt):
        lanes = bt * L
        w = 2 * Cip * lanes * itemsize                   # x block, double-buffered
        w += 2 * Cop * lanes * 4                         # out block (f32), double-buffered
        if im2col:
            w += (K * Cip + K * Cop) * lanes * itemsize  # taps scratches
        w += 4 * (2 * Cop) * (K * max(Cip, Cop)) * itemsize   # weights (tiny)
        return w

    # ---- batch-tile selection: biggest lane-dense tile that fits ------------
    if batch_tile is None:
        divs = [d for d in range(1, B + 1) if B % d == 0]
        dense = [d for d in divs if (d * L) % 128 == 0 and working_set(d) <= budget]
        if dense:
            in_range = [d for d in dense if d * L <= 8192]
            bt = max(in_range) if in_range else min(dense)
            if bt == B and B > 1:
                # Prefer >= 2 grid steps (v7x: 2 TCs share the "parallel" axis)
                # as long as the tile stays past the ~512-lane roofline knee.
                two_step = [d for d in dense if d < B and 512 <= d * L <= 8192]
                if two_step:
                    bt = max(two_step)
            batch_tile = bt
        else:
            fit = [d for d in divs if working_set(d) <= budget]
            batch_tile = max(fit) if fit else 1          # perf cliff, still correct
    Bt = batch_tile
    assert B % Bt == 0, "batch_tile must divide the batch size"

    # ---- lane-dense, channel-padded layout -----------------------------------
    x2d = jnp.transpose(x, (1, 0, 2)).reshape(C_in, B * L)
    if Cip > C_in:
        x2d = jnp.pad(x2d, ((0, Cip - C_in), (0, 0)))
    x2d = x2d.astype(compute_dtype)

    def stack_weight(w, cin, cin_p, cout_p):
        # W[o, t*cin_p + i] = w[o, i, t], zero-padded channels.
        wp = jnp.zeros((cout_p, cin_p, K), jnp.float32).at[:w.shape[0], :cin, :].set(w)
        return jnp.transpose(wp, (0, 2, 1)).reshape(cout_p, K * cin_p)

    w1_s = stack_weight(w1, C_in, Cip, Cop)
    w2_s = stack_weight(w2, C_out, Cop, Cop)
    b1_c = jnp.zeros((Cop, 1), jnp.float32).at[:C_out, 0].set(b1)
    b2_c = jnp.zeros((Cop, 1), jnp.float32).at[:C_out, 0].set(b2)

    wd_s = None
    if not identity:
        bd_c = jnp.zeros((Cop, 1), jnp.float32).at[:C_out, 0].set(bd)
        if fused:
            # Append wd rows, nonzero only in the unshifted (s=0) last-tap block.
            wd_aug = jnp.zeros((Cop, K * Cip), jnp.float32)
            wd_aug = wd_aug.at[:C_out, (K - 1) * Cip:(K - 1) * Cip + C_in].set(wd)
            w1_s = jnp.concatenate([w1_s, wd_aug], axis=0)     # (2*Cop, K*Cip)
            b1_c = jnp.concatenate([b1_c, bd_c], axis=0)       # (2*Cop, 1)
        else:
            wd_s = jnp.zeros((Cop, Cip), jnp.float32).at[:C_out, :C_in].set(wd)

    rows1 = w1_s.shape[0]
    w1_s = w1_s.astype(compute_dtype)
    w2_s = w2_s.astype(compute_dtype)
    if wd_s is not None:
        wd_s = wd_s.astype(compute_dtype)

    kernel = make_temporal_block_kernel(
        Cip=Cip, Cop=Cop, L=L, K=K, DIL=DIL, Bt=Bt, fused=fused,
        sep_downsample=sep, im2col=im2col, compute_dtype=compute_dtype)

    in_specs = [
        pl.BlockSpec((Cip, Bt * L), lambda i: (0, i)),          # x
        pl.BlockSpec((rows1, K * Cip), lambda i: (0, 0)),       # w1 (maybe + wd)
        pl.BlockSpec((rows1, 1), lambda i: (0, 0)),             # b1 (maybe + bd)
        pl.BlockSpec((Cop, K * Cop), lambda i: (0, 0)),         # w2
        pl.BlockSpec((Cop, 1), lambda i: (0, 0)),               # b2
    ]
    args = [x2d, w1_s, b1_c, w2_s, b2_c]
    if sep:
        in_specs += [pl.BlockSpec((Cop, Cip), lambda i: (0, 0)),  # wd
                     pl.BlockSpec((Cop, 1), lambda i: (0, 0))]    # bd
        args += [wd_s, bd_c]

    scratch_shapes = []
    if im2col:
        scratch_shapes = [pltpu.VMEM((K * Cip, Bt * L), compute_dtype),
                          pltpu.VMEM((K * Cop, Bt * L), compute_dtype)]

    grid_spec = pltpu.PrefetchScalarGridSpec(
        num_scalar_prefetch=0,
        grid=(B // Bt,),
        in_specs=in_specs,
        out_specs=pl.BlockSpec((Cop, Bt * L), lambda i: (0, i)),
        scratch_shapes=scratch_shapes,
    )

    out2d = pl.pallas_call(
        kernel,
        out_shape=jax.ShapeDtypeStruct((Cop, B * L), jnp.float32),
        grid_spec=grid_spec,
        compiler_params=pltpu.CompilerParams(
            dimension_semantics=("parallel",),           # batches independent
            vmem_limit_bytes=int(vmem_limit)),
    )(*args)

    out2d = out2d[:C_out]
    return jnp.transpose(out2d.reshape(C_out, B, L), (1, 0, 2))


def temporal_block_reference(x, w1, b1, w2, b2, wd, bd, *, kernel_size, dilation):
    """Pure-JAX reference mirroring the PyTorch module (eval mode)."""
    PAD = (kernel_size - 1) * dilation
    dn = ('NCH', 'OIH', 'NCH')

    def conv(inp, w, b):
        y = lax.conv_general_dilated(inp, w, window_strides=(1,),
                                     padding=[(PAD, PAD)],
                                     rhs_dilation=(dilation,),
                                     dimension_numbers=dn,
                                     precision=lax.Precision.HIGHEST)
        y = y[..., :-PAD] if PAD > 0 else y              # Chomp1d
        return y + b[None, :, None]

    o = jax.nn.relu(conv(x, w1, b1))
    o = jax.nn.relu(conv(o, w2, b2))
    if wd is None:
        res = x
    else:
        res = jnp.einsum('oc,bcl->bol', wd, x,
                         precision=lax.Precision.HIGHEST) + bd[None, :, None]
    return jax.nn.relu(o + res)


if __name__ == "__main__":
    B, L, K, DIL = 8, 128, 3, 2
    key = jax.random.PRNGKey(0)
    ks = jax.random.split(key, 12)

    def uni(k, shape, fan_in):
        bound = 1.0 / np.sqrt(fan_in)
        return jax.random.uniform(k, shape, jnp.float32, -bound, bound)

    # --- case 1: C_in != C_out (1x1 downsample conv, fused into conv1) ------
    C_in, C_out = 4, 8
    x = jax.random.normal(ks[0], (B, C_in, L), dtype=jnp.float32)
    w1 = uni(ks[1], (C_out, C_in, K), C_in * K)
    b1 = uni(ks[2], (C_out,), C_in * K)
    w2 = uni(ks[3], (C_out, C_out, K), C_out * K)
    b2 = uni(ks[4], (C_out,), C_out * K)
    wd = uni(ks[5], (C_out, C_in), C_in)
    bd = uni(ks[6], (C_out,), C_in)

    out = jax.block_until_ready(temporal_block_forward(
        x, w1, b1, w2, b2, wd, bd, kernel_size=K, dilation=DIL))
    ref = temporal_block_reference(x, w1, b1, w2, b2, wd, bd,
                                   kernel_size=K, dilation=DIL)
    np.testing.assert_allclose(np.asarray(out), np.asarray(ref),
                               rtol=1e-4, atol=1e-4)

    # --- case 2: C_in == C_out, downsample=None (identity residual) ---------
    C = 8
    x2 = jax.random.normal(ks[7], (B, C, L), dtype=jnp.float32)
    w1b = uni(ks[8], (C, C, K), C * K)
    b1b = uni(ks[9], (C,), C * K)
    w2b = uni(ks[10], (C, C, K), C * K)
    b2b = uni(ks[11], (C,), C * K)

    out2 = jax.block_until_ready(temporal_block_forward(
        x2, w1b, b1b, w2b, b2b, None, None, kernel_size=K, dilation=DIL))
    ref2 = temporal_block_reference(x2, w1b, b1b, w2b, b2b, None, None,
                                    kernel_size=K, dilation=DIL)
    np.testing.assert_allclose(np.asarray(out2), np.asarray(ref2),
                               rtol=1e-4, atol=1e-4)

    # --- case 3: per-tap accumulation path (no im2col scratch) + bf16 MXU ---
    out3 = jax.block_until_ready(temporal_block_forward(
        x, w1, b1, w2, b2, wd, bd, kernel_size=K, dilation=DIL,
        im2col=False, compute_dtype=jnp.bfloat16))
    np.testing.assert_allclose(np.asarray(out3), np.asarray(ref),
                               rtol=5e-2, atol=5e-2)

    print("KERNEL_OK")
</pallas_src>

<mosaic_0001>
module attributes {stable_mosaic.version = 11 : i64} {
  func.func @kernel(%arg0: i32, %arg1: memref<8x512xf32, #tpu.memory_space<vmem>>, %arg2: memref<16x24xf32, #tpu.memory_space<vmem>>, %arg3: memref<16x1xf32, #tpu.memory_space<vmem>>, %arg4: memref<8x24xf32, #tpu.memory_space<vmem>>, %arg5: memref<8x1xf32, #tpu.memory_space<vmem>>, %arg6: memref<8x512xf32, #tpu.memory_space<vmem>>, %arg7: memref<24x512xf32, #tpu.memory_space<vmem>>, %arg8: memref<24x512xf32, #tpu.memory_space<vmem>>) attributes {dimension_semantics = [#tpu.dimension_semantics<parallel>], iteration_bounds = array<i64: 2>, scalar_prefetch = 0 : i64, scratch_operands = 2 : i64, tpu.core_type = #tpu.core_type<tc>, window_params = [{transform_indices = @transform_0, window_bounds = array<i64: 8, 512>}, {pipeline_mode = #tpu.pipeline_mode<synchronous>, transform_indices = @transform_1, window_bounds = array<i64: 16, 24>}, {pipeline_mode = #tpu.pipeline_mode<synchronous>, transform_indices = @transform_2, window_bounds = array<i64: 16, 1>}, {pipeline_mode = #tpu.pipeline_mode<synchronous>, transform_indices = @transform_3, window_bounds = array<i64: 8, 24>}, {pipeline_mode = #tpu.pipeline_mode<synchronous>, transform_indices = @transform_4, window_bounds = array<i64: 8, 1>}, {transform_indices = @transform_5, window_bounds = array<i64: 8, 512>}]} {
    %0 = tpu.iota {dimensions = array<i32: 1>} : vector<1x512xi32>
    %c127_i32 = arith.constant 127 : i32
    %1 = vector.broadcast %c127_i32 : i32 to vector<1x512xi32>
    %2 = arith.andi %0, %1 : vector<1x512xi32>
    %c0 = arith.constant 0 : index
    %c0_0 = arith.constant 0 : index
    %3 = vector.load %arg1[%c0, %c0_0] : memref<8x512xf32, #tpu.memory_space<vmem>>, vector<8x512xf32>
    %c0_1 = arith.constant 0 : index
    %c0_2 = arith.constant 0 : index
    %4 = vector.load %arg2[%c0_1, %c0_2] : memref<16x24xf32, #tpu.memory_space<vmem>>, vector<16x24xf32>
    %c4_i32 = arith.constant 4 : i32
    %5 = tpu.dynamic_rotate %3 by %c4_i32 dim 1 : vector<8x512xf32>, i32 -> vector<8x512xf32>
    %c4_i32_3 = arith.constant 4 : i32
    %6 = vector.broadcast %c4_i32_3 : i32 to vector<1x512xi32>
    %7 = arith.cmpi slt, %2, %6 : vector<1x512xi32>
    %cst = arith.constant 0.000000e+00 : f32
    %8 = vector.shape_cast %7 : vector<1x512xi1> to vector<1x512xi1>
    %9 = vector.broadcast %8 : vector<1x512xi1> to vector<8x512xi1>
    %10 = vector.broadcast %cst : f32 to vector<8x512xf32>
    %11 = arith.select %9, %10, %5 : vector<8x512xi1>, vector<8x512xf32>
    %c0_4 = arith.constant 0 : index
    %c0_5 = arith.constant 0 : index
    %12 = vector.load %arg7[%c0_4, %c0_5] : memref<24x512xf32, #tpu.memory_space<vmem>>, vector<8x512xf32>
    tpu.vector_store %arg7[%c0_4, %c0_5], %11 {strides = array<i32>} : memref<24x512xf32, #tpu.memory_space<vmem>>, vector<8x512xf32>,
    %c2_i32 = arith.constant 2 : i32
    %13 = tpu.dynamic_rotate %3 by %c2_i32 dim 1 : vector<8x512xf32>, i32 -> vector<8x512xf32>
    %c2_i32_6 = arith.constant 2 : i32
    %14 = vector.broadcast %c2_i32_6 : i32 to vector<1x512xi32>
    %15 = arith.cmpi slt, %2, %14 : vector<1x512xi32>
    %cst_7 = arith.constant 0.000000e+00 : f32
    %16 = vector.shape_cast %15 : vector<1x512xi1> to vector<1x512xi1>
    %17 = vector.broadcast %16 : vector<1x512xi1> to vector<8x512xi1>
    %18 = vector.broadcast %cst_7 : f32 to vector<8x512xf32>
    %19 = arith.select %17, %18, %13 : vector<8x512xi1>, vector<8x512xf32>
    %c8 = arith.constant 8 : index
    %c0_8 = arith.constant 0 : index
    %20 = vector.load %arg7[%c8, %c0_8] : memref<24x512xf32, #tpu.memory_space<vmem>>, vector<8x512xf32>
    tpu.vector_store %arg7[%c8, %c0_8], %19 {strides = array<i32>} : memref<24x512xf32, #tpu.memory_space<vmem>>, vector<8x512xf32>,
    %c16 = arith.constant 16 : index
    %c0_9 = arith.constant 0 : index
    %21 = vector.load %arg7[%c16, %c0_9] : memref<24x512xf32, #tpu.memory_space<vmem>>, vector<8x512xf32>
    tpu.vector_store %arg7[%c16, %c0_9], %3 {strides = array<i32>} : memref<24x512xf32, #tpu.memory_space<vmem>>, vector<8x512xf32>,
    %c0_10 = arith.constant 0 : index
    %c0_11 = arith.constant 0 : index
    %22 = vector.load %arg7[%c0_10, %c0_11] : memref<24x512xf32, #tpu.memory_space<vmem>>, vector<24x512xf32>
    %cst_12 = arith.constant dense<0.000000e+00> : vector<16x512xf32>
    %23 = tpu.matmul %4, %22, %cst_12 {dimension_numbers = #tpu.dot_dimension_numbers<[1], [0], [0], [1], [0, 0, 1, 1], [], []>} : vector<16x24xf32>, vector<24x512xf32>, vector<16x512xf32> -> vector<16x512xf32>
    %c0_13 = arith.constant 0 : index
    %c0_14 = arith.constant 0 : index
    %24 = vector.load %arg3[%c0_13, %c0_14] : memref<16x1xf32, #tpu.memory_space<vmem>>, vector<16x1xf32>
    %25 = vector.broadcast %24 : vector<16x1xf32> to vector<16x512xf32>
    %26 = arith.addf %23, %25 : vector<16x512xf32>
    %27 = vector.extract_strided_slice %26 {offsets = [0, 0], sizes = [8, 512], strides = [1, 1]} : vector<16x512xf32> to vector<8x512xf32>
    %cst_15 = arith.constant 0.000000e+00 : f32
    %28 = vector.broadcast %cst_15 : f32 to vector<8x512xf32>
    %29 = arith.maximumf %27, %28 : vector<8x512xf32>
    %30 = vector.extract_strided_slice %26 {offsets = [8, 0], sizes = [8, 512], strides = [1, 1]} : vector<16x512xf32> to vector<8x512xf32>
    %c0_16 = arith.constant 0 : index
    %c0_17 = arith.constant 0 : index
    %31 = vector.load %arg4[%c0_16, %c0_17] : memref<8x24xf32, #tpu.memory_space<vmem>>, vector<8x24xf32>
    %c4_i32_18 = arith.constant 4 : i32
    %32 = tpu.dynamic_rotate %29 by %c4_i32_18 dim 1 : vector<8x512xf32>, i32 -> vector<8x512xf32>
    %c4_i32_19 = arith.constant 4 : i32
    %33 = vector.broadcast %c4_i32_19 : i32 to vector<1x512xi32>
    %34 = arith.cmpi slt, %2, %33 : vector<1x512xi32>
    %cst_20 = arith.constant 0.000000e+00 : f32
    %35 = vector.shape_cast %34 : vector<1x512xi1> to vector<1x512xi1>
    %36 = vector.broadcast %35 : vector<1x512xi1> to vector<8x512xi1>
    %37 = vector.broadcast %cst_20 : f32 to vector<8x512xf32>
    %38 = arith.select %36, %37, %32 : vector<8x512xi1>, vector<8x512xf32>
    %c0_21 = arith.constant 0 : index
    %c0_22 = arith.constant 0 : index
    %39 = vector.load %arg8[%c0_21, %c0_22] : memref<24x512xf32, #tpu.memory_space<vmem>>, vector<8x512xf32>
    tpu.vector_store %arg8[%c0_21, %c0_22], %38 {strides = array<i32>} : memref<24x512xf32, #tpu.memory_space<vmem>>, vector<8x512xf32>,
    %c2_i32_23 = arith.constant 2 : i32
    %40 = tpu.dynamic_rotate %29 by %c2_i32_23 dim 1 : vector<8x512xf32>, i32 -> vector<8x512xf32>
    %c2_i32_24 = arith.constant 2 : i32
    %41 = vector.broadcast %c2_i32_24 : i32 to vector<1x512xi32>
    %42 = arith.cmpi slt, %2, %41 : vector<1x512xi32>
    %cst_25 = arith.constant 0.000000e+00 : f32
    %43 = vector.shape_cast %42 : vector<1x512xi1> to vector<1x512xi1>
    %44 = vector.broadcast %43 : vector<1x512xi1> to vector<8x512xi1>
    %45 = vector.broadcast %cst_25 : f32 to vector<8x512xf32>
    %46 = arith.select %44, %45, %40 : vector<8x512xi1>, vector<8x512xf32>
    %c8_26 = arith.constant 8 : index
    %c0_27 = arith.constant 0 : index
    %47 = vector.load %arg8[%c8_26, %c0_27] : memref<24x512xf32, #tpu.memory_space<vmem>>, vector<8x512xf32>
    tpu.vector_store %arg8[%c8_26, %c0_27], %46 {strides = array<i32>} : memref<24x512xf32, #tpu.memory_space<vmem>>, vector<8x512xf32>,
    %c16_28 = arith.constant 16 : index
    %c0_29 = arith.constant 0 : index
    %48 = vector.load %arg8[%c16_28, %c0_29] : memref<24x512xf32, #tpu.memory_space<vmem>>, vector<8x512xf32>
    tpu.vector_store %arg8[%c16_28, %c0_29], %29 {strides = array<i32>} : memref<24x512xf32, #tpu.memory_space<vmem>>, vector<8x512xf32>,
    %c0_30 = arith.constant 0 : index
    %c0_31 = arith.constant 0 : index
    %49 = vector.load %arg8[%c0_30, %c0_31] : memref<24x512xf32, #tpu.memory_space<vmem>>, vector<24x512xf32>
    %cst_32 = arith.constant dense<0.000000e+00> : vector<8x512xf32>
    %50 = tpu.matmul %31, %49, %cst_32 {dimension_numbers = #tpu.dot_dimension_numbers<[1], [0], [0], [1], [0, 0, 1, 1], [], []>} : vector<8x24xf32>, vector<24x512xf32>, vector<8x512xf32> -> vector<8x512xf32>
    %c0_33 = arith.constant 0 : index
    %c0_34 = arith.constant 0 : index
    %51 = vector.load %arg5[%c0_33, %c0_34] : memref<8x1xf32, #tpu.memory_space<vmem>>, vector<8x1xf32>
    %52 = vector.broadcast %51 : vector<8x1xf32> to vector<8x512xf32>
    %53 = arith.addf %50, %52 : vector<8x512xf32>
    %cst_35 = arith.constant 0.000000e+00 : f32
    %54 = vector.broadcast %cst_35 : f32 to vector<8x512xf32>
    %55 = arith.maximumf %53, %54 : vector<8x512xf32>
    %56 = arith.addf %55, %30 : vector<8x512xf32>
    %cst_36 = arith.constant 0.000000e+00 : f32
    %57 = vector.broadcast %cst_36 : f32 to vector<8x512xf32>
    %58 = arith.maximumf %56, %57 : vector<8x512xf32>
    %c0_37 = arith.constant 0 : index
    %c0_38 = arith.constant 0 : index
    %59 = vector.load %arg6[%c0_37, %c0_38] : memref<8x512xf32, #tpu.memory_space<vmem>>, vector<8x512xf32>
    tpu.vector_store %arg6[%c0_37, %c0_38], %58 {strides = array<i32>} : memref<8x512xf32, #tpu.memory_space<vmem>>, vector<8x512xf32>,
    return
  }
  func.func @transform_0(%arg0: i32) -> (i32, i32) {
    %c0_i32 = arith.constant 0 : i32
    %c0_i32_0 = arith.constant 0 : i32
    return %c0_i32, %arg0 : i32, i32
  }
  func.func @transform_1(%arg0: i32) -> (i32, i32) {
    %c0_i32 = arith.constant 0 : i32
    %c0_i32_0 = arith.constant 0 : i32
    %c0_i32_1 = arith.constant 0 : i32
    return %c0_i32, %c0_i32_0 : i32, i32
  }
  func.func @transform_2(%arg0: i32) -> (i32, i32) {
    %c0_i32 = arith.constant 0 : i32
    %c0_i32_0 = arith.constant 0 : i32
    %c0_i32_1 = arith.constant 0 : i32
    return %c0_i32, %c0_i32_0 : i32, i32
  }
  func.func @transform_3(%arg0: i32) -> (i32, i32) {
    %c0_i32 = arith.constant 0 : i32
    %c0_i32_0 = arith.constant 0 : i32
    %c0_i32_1 = arith.constant 0 : i32
    return %c0_i32, %c0_i32_0 : i32, i32
  }
  func.func @transform_4(%arg0: i32) -> (i32, i32) {
    %c0_i32 = arith.constant 0 : i32
    %c0_i32_0 = arith.constant 0 : i32
    %c0_i32_1 = arith.constant 0 : i32
    return %c0_i32, %c0_i32_0 : i32, i32
  }
  func.func @transform_5(%arg0: i32) -> (i32, i32) {
    %c0_i32 = arith.constant 0 : i32
    %c0_i32_0 = arith.constant 0 : i32
    return %c0_i32, %arg0 : i32, i32
  }
}

</mosaic_0001>

<llo_original>
// kernel: tpu_custom_call.1
$region0: #{tpu_custom_call.1}
  #allocation0 [shape = 'u32[]', space=smem, size = 0x4, offset = 0x4, fixed_abs, tag = 'smem constant byte address 0x4 - core index']
  #allocation1 [shape = 'u32[144,128]{1,0:T(1,128)}', space=vmem, size = 0x12000, scoped, tag = 'internal scratch']
  #allocation2 [shape = 'f32[24,512]{1,0:T(8,128)}', space=vmem, size = 0xc000, scoped, tag = 'scratch operand']
  #allocation3 [shape = 'f32[24,512]{1,0:T(8,128)}', space=vmem, size = 0xc000, scoped, tag = 'scratch operand']
  %s0 = inlined_call_operand.hbm [shape: f32[8,1024], index: 0, kind: input, shape index: {}]
  %s1 = inlined_call_operand.vmem [shape: f32[16,24], index: 1, kind: input, shape index: {}]
  %s2 = inlined_call_operand.vmem [shape: f32[16,1], index: 2, kind: input, shape index: {}]
  %s3 = inlined_call_operand.vmem [shape: f32[8,24], index: 3, kind: input, shape index: {}]
  %s4 = inlined_call_operand.vmem [shape: f32[8,1], index: 4, kind: input, shape index: {}]
  %s5 = inlined_call_operand.hbm [shape: f32[8,1024], index: 5, kind: output, shape index: {}]
  %s6 = sld [smem:[#allocation0]]
  $region57: #{tpu_custom_call.1} parent=0
    _
  %s8 = ssub.s32 1, %s6
  %s9 = scalar_select 0, %s8, %s6
  $region1: #{tpu_custom_call.1} parent=0
    #allocation4 [shape = 'u8[32768]{0}', space=vmem, size = 0x8000, scoped, tag = 'input window, operand 0']
    #allocation5 [shape = 's32[2]{0}', space=sflag, size = 0x8, scoped, tag = 'scoped memory for tpu_custom_call.1']
    #allocation6 [shape = 's32[2]{0}', space=sflag, size = 0x8, scoped, tag = 'scoped memory for tpu_custom_call.1']
    #allocation7 [shape = 'u8[32768]{0}', space=vmem, size = 0x8000, scoped, tag = 'output window, operand 0']
    %10 = vsyncpa [#allocation5], 0
    %s11 = scalar_lea.sflag [#allocation5], 1
    %12 = vsyncpa %s11, 0
    %13 = vsyncpa [#allocation6], 0
    %s14 = scalar_lea.sflag [#allocation6], 1
    %15 = vsyncpa %s14, 0
    loop: start=0, step=1, limit=4
    $region2: #{tpu_custom_call.1} parent=1 // loop_pre_header
      _
    $region3: #{tpu_custom_call.1} parent=1 // loop_header
      %s17 = sphi 0, %s21
      %p18 = scmp.ge.s32.totalorder %s17, 4
      %s27 = sphi 0, %s29
      %s30 = sphi 0, %s27
      %s31 = sphi 0, %s30
      %s47 = sphi 0, %s31
      %s51 = sphi 0, %s51
      %s53 = sphi 0, %s51
      %s54 = sphi 0, %s53
      %s68 = sphi 0, %s54
      %s72 = sphi 0, %s72
      %s74 = sphi 0, %s72
      %s75 = sphi 0, %s74
      %s89 = sphi 0, %s75
      %s93 = sphi 0, %s93
      %s95 = sphi 0, %s93
      %s96 = sphi 0, %s95
      %s110 = sphi 0, %s96
      %s114 = sphi 0, %s114
      %s116 = sphi 0, %s114
      %s117 = sphi 0, %s116
      %s131 = sphi 0, %s117
      %s137 = sphi 0, %s139
      %s140 = sphi 0, %s137
      %s141 = sphi 0, %s140
      %s157 = sphi 0, %s141
    $region4: #{tpu_custom_call.1} parent=1 // loop_header_branch
      %20 = sbr.rel (%p18) target = $region8
    $region5: #{tpu_custom_call.1} parent=1 // loop_body
      %s22 = ssub.s32 %s17, 1
      %s23 = ssub.s32 %s17, 2
      %s24 = sadd.s32 %s17, 1
      %s25 = ssub.s32 %s17, %s24
      %p26 = scmp.eq.s32.totalorder %s25, 0
      %s28 = sadd.s32 %s27, 1
      %s29 = scalar_select %p26, %s27, %s28
      %p32 = pneg %p26
      %p33 = scmp.eq.s32.totalorder %s17, 1
      %p34 = por %p32, %p33
      %p35 = scmp.ne.s32.totalorder %s27, %s30
      %p36 = scmp.eq.s32.totalorder %s17, 0
      %p37 = por %p35, %p36
      %p38 = scmp.ne.s32.totalorder %s27, %s30
      %p39 = scmp.eq.s32.totalorder %s22, 1
      %p40 = por %p38, %p39
      %p41 = scmp.ne.s32.totalorder %s30, %s31
      %p42 = scmp.eq.s32.totalorder %s22, 0
      %p43 = por %p41, %p42
      %p44 = scmp.ne.s32.totalorder %s30, %s31
      %p45 = scmp.eq.s32.totalorder %s23, 1
      %p46 = por %p44, %p45
      %p48 = scmp.ne.s32.totalorder %s31, %s47
      %p49 = scmp.eq.s32.totalorder %s23, 0
      %p50 = por %p48, %p49
      %s52 = sadd.s32 %s51, 1
      %p55 = scmp.eq.s32.totalorder %s17, 1
      %p56 = scmp.ne.s32.totalorder %s51, %s53
      %p57 = scmp.eq.s32.totalorder %s17, 0
      %p58 = por %p56, %p57
      %p59 = scmp.ne.s32.totalorder %s51, %s53
      %p60 = scmp.eq.s32.totalorder %s22, 1
      %p61 = por %p59, %p60
      %p62 = scmp.ne.s32.totalorder %s53, %s54
      %p63 = scmp.eq.s32.totalorder %s22, 0
      %p64 = por %p62, %p63
      %p65 = scmp.ne.s32.totalorder %s53, %s54
      %p66 = scmp.eq.s32.totalorder %s23, 1
      %p67 = por %p65, %p66
      %p69 = scmp.ne.s32.totalorder %s54, %s68
      %p70 = scmp.eq.s32.totalorder %s23, 0
      %p71 = por %p69, %p70
      %s73 = sadd.s32 %s72, 1
      %p76 = scmp.eq.s32.totalorder %s17, 1
      %p77 = scmp.ne.s32.totalorder %s72, %s74
      %p78 = scmp.eq.s32.totalorder %s17, 0
      %p79 = por %p77, %p78
      %p80 = scmp.ne.s32.totalorder %s72, %s74
      %p81 = scmp.eq.s32.totalorder %s22, 1
      %p82 = por %p80, %p81
      %p83 = scmp.ne.s32.totalorder %s74, %s75
      %p84 = scmp.eq.s32.totalorder %s22, 0
      %p85 = por %p83, %p84
      %p86 = scmp.ne.s32.totalorder %s74, %s75
      %p87 = scmp.eq.s32.totalorder %s23, 1
      %p88 = por %p86, %p87
      %p90 = scmp.ne.s32.totalorder %s75, %s89
      %p91 = scmp.eq.s32.totalorder %s23, 0
      %p92 = por %p90, %p91
      %s94 = sadd.s32 %s93, 1
      %p97 = scmp.eq.s32.totalorder %s17, 1
      %p98 = scmp.ne.s32.totalorder %s93, %s95
      %p99 = scmp.eq.s32.totalorder %s17, 0
      %p100 = por %p98, %p99
      %p101 = scmp.ne.s32.totalorder %s93, %s95
      %p102 = scmp.eq.s32.totalorder %s22, 1
      %p103 = por %p101, %p102
      %p104 = scmp.ne.s32.totalorder %s95, %s96
      %p105 = scmp.eq.s32.totalorder %s22, 0
      %p106 = por %p104, %p105
      %p107 = scmp.ne.s32.totalorder %s95, %s96
      %p108 = scmp.eq.s32.totalorder %s23, 1
      %p109 = por %p107, %p108
      %p111 = scmp.ne.s32.totalorder %s96, %s110
      %p112 = scmp.eq.s32.totalorder %s23, 0
      %p113 = por %p111, %p112
      %s115 = sadd.s32 %s114, 1
      %p118 = scmp.eq.s32.totalorder %s17, 1
      %p119 = scmp.ne.s32.totalorder %s114, %s116
      %p120 = scmp.eq.s32.totalorder %s17, 0
      %p121 = por %p119, %p120
      %p122 = scmp.ne.s32.totalorder %s114, %s116
      %p123 = scmp.eq.s32.totalorder %s22, 1
      %p124 = por %p122, %p123
      %p125 = scmp.ne.s32.totalorder %s116, %s117
      %p126 = scmp.eq.s32.totalorder %s22, 0
      %p127 = por %p125, %p126
      %p128 = scmp.ne.s32.totalorder %s116, %s117
      %p129 = scmp.eq.s32.totalorder %s23, 1
      %p130 = por %p128, %p129
      %p132 = scmp.ne.s32.totalorder %s117, %s131
      %p133 = scmp.eq.s32.totalorder %s23, 0
      %p134 = por %p132, %p133
      %s135 = ssub.s32 %s17, %s24
      %p136 = scmp.eq.s32.totalorder %s135, 0
      %s138 = sadd.s32 %s137, 1
      %s139 = scalar_select %p136, %s137, %s138
      %p142 = pneg %p136
      %p143 = scmp.eq.s32.totalorder %s17, 1
      %p144 = por %p142, %p143
      %p145 = scmp.ne.s32.totalorder %s137, %s140
      %p146 = scmp.eq.s32.totalorder %s17, 0
      %p147 = por %p145, %p146
      %p148 = scmp.ne.s32.totalorder %s137, %s140
      %p149 = scmp.eq.s32.totalorder %s22, 1
      %p150 = por %p148, %p149
      %p151 = scmp.ne.s32.totalorder %s140, %s141
      %p152 = scmp.eq.s32.totalorder %s22, 0
      %p153 = por %p151, %p152
      %p154 = scmp.ne.s32.totalorder %s140, %s141
      %p155 = scmp.eq.s32.totalorder %s23, 1
      %p156 = por %p154, %p155
      %p158 = scmp.ne.s32.totalorder %s141, %s157
      %p159 = scmp.eq.s32.totalorder %s23, 0
      %p160 = por %p158, %p159
      %p161 = scmp.le.s32.totalorder 1, %s17
      %p162 = scmp.lt.s32.totalorder %s17, 3
      %p163 = pnand %p161, %p162
      %p164 = pneg %p163
      // Predicated region
      $region9: #{tpu_custom_call.1} parent=5 // pred_check
        _
      $region10: #{tpu_custom_call.1} parent=5 // pred_check_branch
        %166 = sbr.rel (%p163) target = $region12
      $region11: #{tpu_custom_call.1} parent=5 // pred_region
        %s167 = ssub.s32 %s17, 1
        // Predicated region
        $region13: #{tpu_custom_call.1} parent=11 // pred_check
          %p168 = pneg %p64
        $region14: #{tpu_custom_call.1} parent=11 // pred_check_branch
          %170 = sbr.rel (%p168) target = $region16
        $region15: #{tpu_custom_call.1} parent=11 // pred_region
          _
        $region16: #{tpu_custom_call.1} parent=11 // pred_fallthru
          _
        // Predicated region
        $region17: #{tpu_custom_call.1} parent=11 // pred_check
          %p171 = pneg %p85
        $region18: #{tpu_custom_call.1} parent=11 // pred_check_branch
          %173 = sbr.rel (%p171) target = $region20
        $region19: #{tpu_custom_call.1} parent=11 // pred_region
          _
        $region20: #{tpu_custom_call.1} parent=11 // pred_fallthru
          _
        // Predicated region
        $region21: #{tpu_custom_call.1} parent=11 // pred_check
          %p174 = pneg %p106
        $region22: #{tpu_custom_call.1} parent=11 // pred_check_branch
          %176 = sbr.rel (%p174) target = $region24
        $region23: #{tpu_custom_call.1} parent=11 // pred_region
          _
        $region24: #{tpu_custom_call.1} parent=11 // pred_fallthru
          _
        // Predicated region
        $region25: #{tpu_custom_call.1} parent=11 // pred_check
          %p177 = pneg %p127
        $region26: #{tpu_custom_call.1} parent=11 // pred_check_branch
          %179 = sbr.rel (%p177) target = $region28
        $region27: #{tpu_custom_call.1} parent=11 // pred_region
          _
        $region28: #{tpu_custom_call.1} parent=11 // pred_fallthru
          _
      $region12: #{tpu_custom_call.1} parent=5 // pred_fallthru
        _
      %p180 = scmp.lt.s32.totalorder %s17, 2
      // Predicated region
      $region29: #{tpu_custom_call.1} parent=5 // pred_check
        %p181 = pneg %p180
      $region30: #{tpu_custom_call.1} parent=5 // pred_check_branch
        %183 = sbr.rel (%p181) target = $region32
      $region31: #{tpu_custom_call.1} parent=5 // pred_region
        // Predicated region
        $region33: #{tpu_custom_call.1} parent=31 // pred_check
          %p184 = pneg %p37
        $region34: #{tpu_custom_call.1} parent=31 // pred_check_branch
          %186 = sbr.rel (%p184) target = $region36
        $region35: #{tpu_custom_call.1} parent=31 // pred_region
          %s187 = sand.u32 %s27, 1
          %s188 = scalar_lea.sflag [#allocation5], %s187
          %s189 = sand.u32 %s27, 1
          %s190 = smul.addr %s189, 32
          %s191 = scalar_lea.vmem [#allocation4], %s190
          %s192 = smul.u32 4, %s17
          %s194 = ssub.s32 512, 512
          %195 = vsyncadd %s188, %s194
          %s196 = smul.addr %s192, 128
          %s197 = scalar_lea.hbm %s0, %s196
          %s199 = sshll.u32 %s191, 4
          %s200 = int_to_ptr.vmem [resolvable:$true] %s199
          %202 = dma.hbm_to_vmem [thread:$0]  %s197, 512, %s200, %s188
        $region36: #{tpu_custom_call.1} parent=31 // pred_fallthru
          _
      $region32: #{tpu_custom_call.1} parent=5 // pred_fallthru
        _
      %p203 = scmp.le.s32.totalorder 1, %s17
      %p204 = scmp.lt.s32.totalorder %s17, 3
      %p205 = pnand %p203, %p204
      %p206 = pneg %p205
      // Predicated region
      $region37: #{tpu_custom_call.1} parent=5 // pred_check
        _
      $region38: #{tpu_custom_call.1} parent=5 // pred_check_branch
        %208 = sbr.rel (%p205) target = $region40
      $region39: #{tpu_custom_call.1} parent=5 // pred_region
        %s209 = ssub.s32 %s17, 1
        %s210 = sand.u32 %s30, 1
        %s211 = scalar_lea.sflag [#allocation5], %s210
        %s212 = sand.u32 %s30, 1
        %s213 = smul.addr %s212, 32
        %s214 = scalar_lea.vmem [#allocation4], %s213
        // Predicated region
        $region41: #{tpu_custom_call.1} parent=39 // pred_check
          %p215 = pneg %p43
        $region42: #{tpu_custom_call.1} parent=39 // pred_check_branch
          %217 = sbr.rel (%p215) target = $region44
        $region43: #{tpu_custom_call.1} parent=39 // pred_region
          %218 = dma.done %s211, 512
        $region44: #{tpu_custom_call.1} parent=39 // pred_fallthru
          _
        %s219 = sand.u32 %s30, 1
        %s220 = scalar_lea.sflag [#allocation5], %s219
        %s221 = sand.u32 %s30, 1
        %s222 = smul.addr %s221, 32
        %s223 = scalar_lea.vmem [#allocation4], %s222
        %p224 = pneg %p43
        %p225 = pneg %p40
        %p226 = pneg %p64
        %p227 = pneg %p61
        %p228 = pneg %p85
        %p229 = pneg %p82
        %p230 = pneg %p106
        %p231 = pneg %p103
        %p232 = pneg %p127
        %p233 = pneg %p124
        %p234 = pneg %p153
        %p235 = pneg %p150
        %s236 = sand.u32 %s140, 1
        %s237 = scalar_lea.sflag [#allocation6], %s236
        %s238 = sand.u32 %s140, 1
        %s239 = smul.addr %s238, 32
        %s240 = scalar_lea.vmem [#allocation7], %s239
        %s241 = smul.u32 4, %s22
        %s242 = smul.u32 4, %s22
        %v243 = vlaneseq
        %v244 = vand.u32 %v243, 127
        %v245 = vadd.s32 %v244, 128
        %v246 = vadd.s32 %v244, 256
        %v247 = vadd.s32 %v244, 384
        %v248 = vand.u32 %v244, 127
        %v249 = vand.u32 %v245, 127
        %v250 = vand.u32 %v246, 127
        %v251 = vand.u32 %v247, 127
        %v252 = vld [vmem:[%s214] sm:$0xff]
        %v253 = vld [vmem:[%s214 + $0x8] sm:$0xff]
        %v254 = vld [vmem:[%s214 + $0x10] sm:$0xff]
        %v255 = vld [vmem:[%s214 + $0x18] sm:$0xff]
        %v256 = vld [vmem:[%s1] sm:$0xff]
        %v257 = vld [vmem:[%s1 + $0x8] sm:$0xff]
        %258 = vrot.lane.b32.xlu0 %v252, 4
        %v259 = vpop.permute.xlu0 %258
        %260 = vrot.lane.b32.xlu0 %v253, 4
        %v261 = vpop.permute.xlu0 %260
        %262 = vrot.lane.b32.xlu0 %v254, 4
        %v263 = vpop.permute.xlu0 %262
        %264 = vrot.lane.b32.xlu0 %v255, 4
        %v265 = vpop.permute.xlu0 %264
        %vm266 = vcmp.lt.s32.totalorder %v244, 4
        %v267 = vsel %vm266, %v263, %v265
        %v268 = vsel %vm266, %v261, %v263
        %v269 = vsel %vm266, %v259, %v261
        %v270 = vsel %vm266, %v265, %v259
        %vm271 = vcmp.lt.s32.totalorder %v248, 4
        %vm272 = vcmp.lt.s32.totalorder %v249, 4
        %vm273 = vcmp.lt.s32.totalorder %v250, 4
        %vm274 = vcmp.lt.s32.totalorder %v251, 4
        %v275 = vsel %vm271, 1, 0
        %v276 = vsel %vm272, 1, 0
        %v277 = vsel %vm273, 1, 0
        %v278 = vsel %vm274, 1, 0
        %vm279 = vcmp.eq.s32.totalorder %v275, 1
        %vm280 = vcmp.eq.s32.totalorder %v276, 1
        %vm281 = vcmp.eq.s32.totalorder %v277, 1
        %vm282 = vcmp.eq.s32.totalorder %v278, 1
        %v283 = vsel %vm279, 0.0, %v270
        %v284 = vsel %vm280, 0.0, %v269
        %v285 = vsel %vm281, 0.0, %v268
        %v286 = vsel %vm282, 0.0, %v267
        %287 = vst [vmem:[#allocation2] sm:$0xff] %v283
        %288 = vst [vmem:[#allocation2 + $0x8] sm:$0xff] %v284
        %289 = vst [vmem:[#allocation2 + $0x10] sm:$0xff] %v285
        %290 = vst [vmem:[#allocation2 + $0x18] sm:$0xff] %v286
        %291 = vrot.lane.b32.xlu0 %v252, 2
        %v292 = vpop.permute.xlu0 %291
        %293 = vrot.lane.b32.xlu0 %v253, 2
        %v294 = vpop.permute.xlu0 %293
        %295 = vrot.lane.b32.xlu0 %v254, 2
        %v296 = vpop.permute.xlu0 %295
        %297 = vrot.lane.b32.xlu0 %v255, 2
        %v298 = vpop.permute.xlu0 %297
        %vm299 = vcmp.lt.s32.totalorder %v244, 2
        %v300 = vsel %vm299, %v296, %v298
        %v301 = vsel %vm299, %v294, %v296
        %v302 = vsel %vm299, %v292, %v294
        %v303 = vsel %vm299, %v298, %v292
        %vm304 = vcmp.lt.s32.totalorder %v248, 2
        %vm305 = vcmp.lt.s32.totalorder %v249, 2
        %vm306 = vcmp.lt.s32.totalorder %v250, 2
        %vm307 = vcmp.lt.s32.totalorder %v251, 2
        %v308 = vsel %vm304, 1, 0
        %v309 = vsel %vm305, 1, 0
        %v310 = vsel %vm306, 1, 0
        %v311 = vsel %vm307, 1, 0
        %vm312 = vcmp.eq.s32.totalorder %v308, 1
        %vm313 = vcmp.eq.s32.totalorder %v309, 1
        %vm314 = vcmp.eq.s32.totalorder %v310, 1
        %vm315 = vcmp.eq.s32.totalorder %v311, 1
        %v316 = vsel %vm312, 0.0, %v303
        %v317 = vsel %vm313, 0.0, %v302
        %v318 = vsel %vm314, 0.0, %v301
        %v319 = vsel %vm315, 0.0, %v300
        %320 = vst [vmem:[#allocation2 + $0x20] sm:$0xff] %v316
        %321 = vst [vmem:[#allocation2 + $0x28] sm:$0xff] %v317
        %322 = vst [vmem:[#allocation2 + $0x30] sm:$0xff] %v318
        %323 = vst [vmem:[#allocation2 + $0x38] sm:$0xff] %v319
        %324 = vst [vmem:[#allocation2 + $0x40] sm:$0xff] %v252
        %325 = vst [vmem:[#allocation2 + $0x48] sm:$0xff] %v253
        %326 = vst [vmem:[#allocation2 + $0x50] sm:$0xff] %v254
        %327 = vst [vmem:[#allocation2 + $0x58] sm:$0xff] %v255
        %v328 = vld [vmem:[#allocation2] sm:$0xff]
        %v329 = vld [vmem:[#allocation2 + $0x8] sm:$0xff]
        %v330 = vld [vmem:[#allocation2 + $0x10] sm:$0xff]
        %v331 = vld [vmem:[#allocation2 + $0x18] sm:$0xff]
        %v332 = vld [vmem:[#allocation2 + $0x20] sm:$0xff]
        %v333 = vld [vmem:[#allocation2 + $0x28] sm:$0xff]
        %v334 = vld [vmem:[#allocation2 + $0x30] sm:$0xff]
        %v335 = vld [vmem:[#allocation2 + $0x38] sm:$0xff]
        %v336 = vld [vmem:[#allocation2 + $0x40] sm:$0xff]
        %v337 = vld [vmem:[#allocation2 + $0x48] sm:$0xff]
        %v338 = vld [vmem:[#allocation2 + $0x50] sm:$0xff]
        %v339 = vld [vmem:[#allocation2 + $0x58] sm:$0xff]
        %v340 = vld [vmem:[%s2] sm:$0xff]
        %v341 = vld [vmem:[%s2 + $0x8] sm:$0xff]
        %343 = vset.pattern.permute.xlu0 0
        %344 = vperm.xlu0 %343, %v340
        %v345 = vpop.permute.xlu0 %344
        %348 = vset.pattern.permute.xlu0 0
        %349 = vperm.xlu0 %348, %v341
        %v350 = vpop.permute.xlu0 %349
        %vm352 = vcmask 195584
        %v354 = vsel %vm352, %v256, 0
        %v357 = vsel %vm352, %v257, 0
        %359 = vmatprep.subr.mxu0 %v329
        %360 = vmatpush1.msra.mxu0 %v328
        %361 = vmatprep.subr.mxu0 %v333
        %362 = vmatpush1.msra.mxu0 %v332
        %363 = vmatprep.subr.mxu0 %v337
        %364 = vmatpush1.msra.mxu0 %v336
        %365 = vmatprep.subr.mxu0 0.0
        %366 = vmatpush1.msra.mxu0 0.0
        %367 = vmatprep.subr.mxu0 0.0
        %368 = vmatpush1.msra.mxu0 0.0
        %369 = vmatprep.subr.mxu0 0.0
        %370 = vmatpush1.msra.mxu0 0.0
        %371 = vmatprep.subr.mxu0 0.0
        %372 = vmatpush1.msra.mxu0 0.0
        %373 = vmatprep.subr.mxu0 0.0
        %374 = vmatpush1.msra.mxu0 0.0
        %375 = vmatprep.subr.mxu0 0.0
        %376 = vmatpush1.msra.mxu0 0.0
        %377 = vmatprep.subr.mxu0 0.0
        %378 = vmatpush1.msra.mxu0 0.0
        %379 = vmatprep.subr.mxu0 0.0
        %380 = vmatpush1.msra.mxu0 0.0
        %381 = vmatprep.subr.mxu0 0.0
        %382 = vmatpush1.msra.mxu0 0.0
        %383 = vmatprep.subr.mxu0 0.0
        %384 = vmatpush1.msra.mxu0 0.0
        %385 = vmatprep.subr.mxu0 0.0
        %386 = vmatpush1.msra.mxu0 0.0
        %387 = vmatprep.subr.mxu0 0.0
        %388 = vmatpush1.msra.mxu0 0.0
        %389 = vmatprep.subr.mxu0 0.0
        %390 = vmatpush1.msra.mxu0 0.0
        %391 = vmatprep.subr.mxu0 0.0
        %392 = vmatpush1.msra.mxu0 0.0
        %393 = vmatprep.subr.mxu0 0.0
        %394 = vmatpush1.msra.mxu0 0.0
        %395 = vmatprep.subr.mxu0 0.0
        %396 = vmatpush1.msra.mxu0 0.0
        %397 = vmatprep.subr.mxu0 0.0
        %398 = vmatpush1.msra.mxu0 0.0
        %399 = vmatprep.subr.mxu0 0.0
        %400 = vmatpush1.msra.mxu0 0.0
        %401 = vmatprep.subr.mxu0 0.0
        %402 = vmatpush1.msra.mxu0 0.0
        %403 = vmatprep.subr.mxu0 0.0
        %404 = vmatpush1.msra.mxu0 0.0
        %405 = vmatprep.subr.mxu0 0.0
        %406 = vmatpush1.msra.mxu0 0.0
        %407 = vmatprep.subr.mxu0 0.0
        %408 = vmatpush1.msra.mxu0 0.0
        %409 = vmatprep.subr.mxu0 0.0
        %410 = vmatpush1.msra.mxu0 0.0
        %411 = vmatprep.subr.mxu0 0.0
        %412 = vmatpush1.msra.mxu0 0.0
        %413 = vmatprep.subr.mxu0 0.0
        %414 = vmatpush1.msra.mxu0 0.0
        %415 = vmatprep.subr.mxu0 0.0
        %416 = vmatpush1.msra.mxu0 0.0
        %417 = vmatprep.subr.mxu0 0.0
        %418 = vmatpush1.msra.mxu0 0.0
        %419 = vmatprep.subr.mxu0 0.0
        %420 = vmatpush1.msra.mxu0 0.0
        %421 = vmatprep.subr.mxu0 0.0
        %422 = vmatpush1.msra.mxu0 0.0
        %423 = vmatprep.mubr.f32.mxu0 0.0
        %424 = vmatmul.mubr.f32.gmra.mrb[0].mxu0 %v354
        %v425 = vpop.f32.mrb[0].mxu0
        %v426 = vadd.f32 %v345, %v425
        %v427 = vpop.f32.mrb[0].mxu0
        %v428 = vadd.f32 %v345, %v427
        %429 = vmatprep.mubr.f32.mxu0 0.0
        %430 = vmatmul.mubr.f32.gmra.mrb[0].mxu0 %v357
        %v431 = vpop.f32.mrb[0].mxu0
        %v432 = vadd.f32 %v350, %v431
        %v433 = vpop.f32.mrb[0].mxu0
        %v434 = vadd.f32 %v350, %v433
        %435 = vdwg.mxu0
        %436 = vmatprep.subr.mxu0 %v331
        %437 = vmatpush1.msra.mxu0 %v330
        %438 = vmatprep.subr.mxu0 %v335
        %439 = vmatpush1.msra.mxu0 %v334
        %440 = vmatprep.subr.mxu0 %v339
        %441 = vmatpush1.msra.mxu0 %v338
        %442 = vmatprep.subr.mxu0 0.0
        %443 = vmatpush1.msra.mxu0 0.0
        %444 = vmatprep.subr.mxu0 0.0
        %445 = vmatpush1.msra.mxu0 0.0
        %446 = vmatprep.subr.mxu0 0.0
        %447 = vmatpush1.msra.mxu0 0.0
        %448 = vmatprep.subr.mxu0 0.0
        %449 = vmatpush1.msra.mxu0 0.0
        %450 = vmatprep.subr.mxu0 0.0
        %451 = vmatpush1.msra.mxu0 0.0
        %452 = vmatprep.subr.mxu0 0.0
        %453 = vmatpush1.msra.mxu0 0.0
        %454 = vmatprep.subr.mxu0 0.0
        %455 = vmatpush1.msra.mxu0 0.0
        %456 = vmatprep.subr.mxu0 0.0
        %457 = vmatpush1.msra.mxu0 0.0
        %458 = vmatprep.subr.mxu0 0.0
        %459 = vmatpush1.msra.mxu0 0.0
        %460 = vmatprep.subr.mxu0 0.0
        %461 = vmatpush1.msra.mxu0 0.0
        %462 = vmatprep.subr.mxu0 0.0
        %463 = vmatpush1.msra.mxu0 0.0
        %464 = vmatprep.subr.mxu0 0.0
        %465 = vmatpush1.msra.mxu0 0.0
        %466 = vmatprep.subr.mxu0 0.0
        %467 = vmatpush1.msra.mxu0 0.0
        %468 = vmatprep.subr.mxu0 0.0
        %469 = vmatpush1.msra.mxu0 0.0
        %470 = vmatprep.subr.mxu0 0.0
        %471 = vmatpush1.msra.mxu0 0.0
        %472 = vmatprep.subr.mxu0 0.0
        %473 = vmatpush1.msra.mxu0 0.0
        %474 = vmatprep.subr.mxu0 0.0
        %475 = vmatpush1.msra.mxu0 0.0
        %476 = vmatprep.subr.mxu0 0.0
        %477 = vmatpush1.msra.mxu0 0.0
        %478 = vmatprep.subr.mxu0 0.0
        %479 = vmatpush1.msra.mxu0 0.0
        %480 = vmatprep.subr.mxu0 0.0
        %481 = vmatpush1.msra.mxu0 0.0
        %482 = vmatprep.subr.mxu0 0.0
        %483 = vmatpush1.msra.mxu0 0.0
        %484 = vmatprep.subr.mxu0 0.0
        %485 = vmatpush1.msra.mxu0 0.0
        %486 = vmatprep.subr.mxu0 0.0
        %487 = vmatpush1.msra.mxu0 0.0
        %488 = vmatprep.subr.mxu0 0.0
        %489 = vmatpush1.msra.mxu0 0.0
        %490 = vmatprep.subr.mxu0 0.0
        %491 = vmatpush1.msra.mxu0 0.0
        %492 = vmatprep.subr.mxu0 0.0
        %493 = vmatpush1.msra.mxu0 0.0
        %494 = vmatprep.subr.mxu0 0.0
        %495 = vmatpush1.msra.mxu0 0.0
        %496 = vmatprep.subr.mxu0 0.0
        %497 = vmatpush1.msra.mxu0 0.0
        %498 = vmatprep.subr.mxu0 0.0
        %499 = vmatpush1.msra.mxu0 0.0
        %500 = vmatprep.mubr.f32.mxu0 0.0
        %501 = vmatmul.mubr.f32.gmra.mrb[0].mxu0 %v354
        %v502 = vpop.f32.mrb[0].mxu0
        %v503 = vadd.f32 %v345, %v502
        %v504 = vpop.f32.mrb[0].mxu0
        %v505 = vadd.f32 %v345, %v504
        %506 = vmatprep.mubr.f32.mxu0 0.0
        %507 = vmatmul.mubr.f32.gmra.mrb[0].mxu0 %v357
        %v508 = vpop.f32.mrb[0].mxu0
        %v509 = vadd.f32 %v350, %v508
        %v510 = vpop.f32.mrb[0].mxu0
        %v511 = vadd.f32 %v350, %v510
        %512 = vdwg.mxu0
        %v513 = vmax.f32 %v426, 0.0
        %v514 = vmax.f32 %v428, 0.0
        %v515 = vmax.f32 %v503, 0.0
        %v516 = vmax.f32 %v505, 0.0
        %v517 = vld [vmem:[%s3] sm:$0xff]
        %518 = vrot.lane.b32.xlu0 %v513, 4
        %v519 = vpop.permute.xlu0 %518
        %520 = vrot.lane.b32.xlu0 %v514, 4
        %v521 = vpop.permute.xlu0 %520
        %522 = vrot.lane.b32.xlu0 %v515, 4
        %v523 = vpop.permute.xlu0 %522
        %524 = vrot.lane.b32.xlu0 %v516, 4
        %v525 = vpop.permute.xlu0 %524
        %v526 = vsel %vm266, %v523, %v525
        %v527 = vsel %vm266, %v521, %v523
        %v528 = vsel %vm266, %v519, %v521
        %v529 = vsel %vm266, %v525, %v519
        %v530 = vsel %vm279, 0.0, %v529
        %v531 = vsel %vm280, 0.0, %v528
        %v532 = vsel %vm281, 0.0, %v527
        %v533 = vsel %vm282, 0.0, %v526
        %534 = vst [vmem:[#allocation3] sm:$0xff] %v530
        %535 = vst [vmem:[#allocation3 + $0x8] sm:$0xff] %v531
        %536 = vst [vmem:[#allocation3 + $0x10] sm:$0xff] %v532
        %537 = vst [vmem:[#allocation3 + $0x18] sm:$0xff] %v533
        %538 = vrot.lane.b32.xlu0 %v513, 2
        %v539 = vpop.permute.xlu0 %538
        %540 = vrot.lane.b32.xlu0 %v514, 2
        %v541 = vpop.permute.xlu0 %540
        %542 = vrot.lane.b32.xlu0 %v515, 2
        %v543 = vpop.permute.xlu0 %542
        %544 = vrot.lane.b32.xlu0 %v516, 2
        %v545 = vpop.permute.xlu0 %544
        %v546 = vsel %vm299, %v543, %v545
        %v547 = vsel %vm299, %v541, %v543
        %v548 = vsel %vm299, %v539, %v541
        %v549 = vsel %vm299, %v545, %v539
        %v550 = vsel %vm312, 0.0, %v549
        %v551 = vsel %vm313, 0.0, %v548
        %v552 = vsel %vm314, 0.0, %v547
        %v553 = vsel %vm315, 0.0, %v546
        %554 = vst [vmem:[#allocation3 + $0x20] sm:$0xff] %v550
        %555 = vst [vmem:[#allocation3 + $0x28] sm:$0xff] %v551
        %556 = vst [vmem:[#allocation3 + $0x30] sm:$0xff] %v552
        %557 = vst [vmem:[#allocation3 + $0x38] sm:$0xff] %v553
        %558 = vst [vmem:[#allocation3 + $0x40] sm:$0xff] %v513
        %559 = vst [vmem:[#allocation3 + $0x48] sm:$0xff] %v514
        %560 = vst [vmem:[#allocation3 + $0x50] sm:$0xff] %v515
        %561 = vst [vmem:[#allocation3 + $0x58] sm:$0xff] %v516
        %v562 = vld [vmem:[#allocation3] sm:$0xff]
        %v563 = vld [vmem:[#allocation3 + $0x8] sm:$0xff]
        %v564 = vld [vmem:[#allocation3 + $0x10] sm:$0xff]
        %v565 = vld [vmem:[#allocation3 + $0x18] sm:$0xff]
        %v566 = vld [vmem:[#allocation3 + $0x20] sm:$0xff]
        %v567 = vld [vmem:[#allocation3 + $0x28] sm:$0xff]
        %v568 = vld [vmem:[#allocation3 + $0x30] sm:$0xff]
        %v569 = vld [vmem:[#allocation3 + $0x38] sm:$0xff]
        %v570 = vld [vmem:[#allocation3 + $0x40] sm:$0xff]
        %v571 = vld [vmem:[#allocation3 + $0x48] sm:$0xff]
        %v572 = vld [vmem:[#allocation3 + $0x50] sm:$0xff]
        %v573 = vld [vmem:[#allocation3 + $0x58] sm:$0xff]
        %v574 = vld [vmem:[%s4] sm:$0xff]
        %576 = vset.pattern.permute.xlu0 0
        %577 = vperm.xlu0 %576, %v574
        %v578 = vpop.permute.xlu0 %577
        %v581 = vsel %vm352, %v517, 0
        %583 = vmatprep.subr.mxu0 %v563
        %584 = vmatpush1.msra.mxu0 %v562
        %585 = vmatprep.subr.mxu0 %v567
        %586 = vmatpush1.msra.mxu0 %v566
        %587 = vmatprep.subr.mxu0 %v571
        %588 = vmatpush1.msra.mxu0 %v570
        %589 = vmatprep.subr.mxu0 0.0
        %590 = vmatpush1.msra.mxu0 0.0
        %591 = vmatprep.subr.mxu0 0.0
        %592 = vmatpush1.msra.mxu0 0.0
        %593 = vmatprep.subr.mxu0 0.0
        %594 = vmatpush1.msra.mxu0 0.0
        %595 = vmatprep.subr.mxu0 0.0
        %596 = vmatpush1.msra.mxu0 0.0
        %597 = vmatprep.subr.mxu0 0.0
        %598 = vmatpush1.msra.mxu0 0.0
        %599 = vmatprep.subr.mxu0 0.0
        %600 = vmatpush1.msra.mxu0 0.0
        %601 = vmatprep.subr.mxu0 0.0
        %602 = vmatpush1.msra.mxu0 0.0
        %603 = vmatprep.subr.mxu0 0.0
        %604 = vmatpush1.msra.mxu0 0.0
        %605 = vmatprep.subr.mxu0 0.0
        %606 = vmatpush1.msra.mxu0 0.0
        %607 = vmatprep.subr.mxu0 0.0
        %608 = vmatpush1.msra.mxu0 0.0
        %609 = vmatprep.subr.mxu0 0.0
        %610 = vmatpush1.msra.mxu0 0.0
        %611 = vmatprep.subr.mxu0 0.0
        %612 = vmatpush1.msra.mxu0 0.0
        %613 = vmatprep.subr.mxu0 0.0
        %614 = vmatpush1.msra.mxu0 0.0
        %615 = vmatprep.subr.mxu0 0.0
        %616 = vmatpush1.msra.mxu0 0.0
        %617 = vmatprep.subr.mxu0 0.0
        %618 = vmatpush1.msra.mxu0 0.0
        %619 = vmatprep.subr.mxu0 0.0
        %620 = vmatpush1.msra.mxu0 0.0
        %621 = vmatprep.subr.mxu0 0.0
        %622 = vmatpush1.msra.mxu0 0.0
        %623 = vmatprep.subr.mxu0 0.0
        %624 = vmatpush1.msra.mxu0 0.0
        %625 = vmatprep.subr.mxu0 0.0
        %626 = vmatpush1.msra.mxu0 0.0
        %627 = vmatprep.subr.mxu0 0.0
        %628 = vmatpush1.msra.mxu0 0.0
        %629 = vmatprep.subr.mxu0 0.0
        %630 = vmatpush1.msra.mxu0 0.0
        %631 = vmatprep.subr.mxu0 0.0
        %632 = vmatpush1.msra.mxu0 0.0
        %633 = vmatprep.subr.mxu0 0.0
        %634 = vmatpush1.msra.mxu0 0.0
        %635 = vmatprep.subr.mxu0 0.0
        %636 = vmatpush1.msra.mxu0 0.0
        %637 = vmatprep.subr.mxu0 0.0
        %638 = vmatpush1.msra.mxu0 0.0
        %639 = vmatprep.subr.mxu0 0.0
        %640 = vmatpush1.msra.mxu0 0.0
        %641 = vmatprep.subr.mxu0 0.0
        %642 = vmatpush1.msra.mxu0 0.0
        %643 = vmatprep.subr.mxu0 0.0
        %644 = vmatpush1.msra.mxu0 0.0
        %645 = vmatprep.subr.mxu0 0.0
        %646 = vmatpush1.msra.mxu0 0.0
        %647 = vmatprep.mubr.f32.mxu0 0.0
        %648 = vmatmul.mubr.f32.gmra.mrb[0].mxu0 %v581
        %v649 = vpop.f32.mrb[0].mxu0
        %v650 = vadd.f32 %v578, %v649
        %v651 = vpop.f32.mrb[0].mxu0
        %v652 = vadd.f32 %v578, %v651
        %653 = vdwg.mxu0
        %654 = vmatprep.subr.mxu0 %v565
        %655 = vmatpush1.msra.mxu0 %v564
        %656 = vmatprep.subr.mxu0 %v569
        %657 = vmatpush1.msra.mxu0 %v568
        %658 = vmatprep.subr.mxu0 %v573
        %659 = vmatpush1.msra.mxu0 %v572
        %660 = vmatprep.subr.mxu0 0.0
        %661 = vmatpush1.msra.mxu0 0.0
        %662 = vmatprep.subr.mxu0 0.0
        %663 = vmatpush1.msra.mxu0 0.0
        %664 = vmatprep.subr.mxu0 0.0
        %665 = vmatpush1.msra.mxu0 0.0
        %666 = vmatprep.subr.mxu0 0.0
        %667 = vmatpush1.msra.mxu0 0.0
        %668 = vmatprep.subr.mxu0 0.0
        %669 = vmatpush1.msra.mxu0 0.0
        %670 = vmatprep.subr.mxu0 0.0
        %671 = vmatpush1.msra.mxu0 0.0
        %672 = vmatprep.subr.mxu0 0.0
        %673 = vmatpush1.msra.mxu0 0.0
        %674 = vmatprep.subr.mxu0 0.0
        %675 = vmatpush1.msra.mxu0 0.0
        %676 = vmatprep.subr.mxu0 0.0
        %677 = vmatpush1.msra.mxu0 0.0
        %678 = vmatprep.subr.mxu0 0.0
        %679 = vmatpush1.msra.mxu0 0.0
        %680 = vmatprep.subr.mxu0 0.0
        %681 = vmatpush1.msra.mxu0 0.0
        %682 = vmatprep.subr.mxu0 0.0
        %683 = vmatpush1.msra.mxu0 0.0
        %684 = vmatprep.subr.mxu0 0.0
        %685 = vmatpush1.msra.mxu0 0.0
        %686 = vmatprep.subr.mxu0 0.0
        %687 = vmatpush1.msra.mxu0 0.0
        %688 = vmatprep.subr.mxu0 0.0
        %689 = vmatpush1.msra.mxu0 0.0
        %690 = vmatprep.subr.mxu0 0.0
        %691 = vmatpush1.msra.mxu0 0.0
        %692 = vmatprep.subr.mxu0 0.0
        %693 = vmatpush1.msra.mxu0 0.0
        %694 = vmatprep.subr.mxu0 0.0
        %695 = vmatpush1.msra.mxu0 0.0
        %696 = vmatprep.subr.mxu0 0.0
        %697 = vmatpush1.msra.mxu0 0.0
        %698 = vmatprep.subr.mxu0 0.0
        %699 = vmatpush1.msra.mxu0 0.0
        %700 = vmatprep.subr.mxu0 0.0
        %701 = vmatpush1.msra.mxu0 0.0
        %702 = vmatprep.subr.mxu0 0.0
        %703 = vmatpush1.msra.mxu0 0.0
        %704 = vmatprep.subr.mxu0 0.0
        %705 = vmatpush1.msra.mxu0 0.0
        %706 = vmatprep.subr.mxu0 0.0
        %707 = vmatpush1.msra.mxu0 0.0
        %708 = vmatprep.subr.mxu0 0.0
        %709 = vmatpush1.msra.mxu0 0.0
        %710 = vmatprep.subr.mxu0 0.0
        %711 = vmatpush1.msra.mxu0 0.0
        %712 = vmatprep.subr.mxu0 0.0
        %713 = vmatpush1.msra.mxu0 0.0
        %714 = vmatprep.subr.mxu0 0.0
        %715 = vmatpush1.msra.mxu0 0.0
        %716 = vmatprep.subr.mxu0 0.0
        %717 = vmatpush1.msra.mxu0 0.0
        %718 = vmatprep.mubr.f32.mxu0 0.0
        %719 = vmatmul.mubr.f32.gmra.mrb[0].mxu0 %v581
        %v720 = vpop.f32.mrb[0].mxu0
        %v721 = vadd.f32 %v578, %v720
        %v722 = vpop.f32.mrb[0].mxu0
        %v723 = vadd.f32 %v578, %v722
        %724 = vdwg.mxu0
        %v725 = vmax.f32 %v650, 0.0
        %v726 = vmax.f32 %v652, 0.0
        %v727 = vmax.f32 %v721, 0.0
        %v728 = vmax.f32 %v723, 0.0
        %v729 = vadd.f32 %v725, %v432
        %v730 = vadd.f32 %v726, %v434
        %v731 = vadd.f32 %v727, %v509
        %v732 = vadd.f32 %v728, %v511
        %v733 = vmax.f32 %v729, 0.0
        %v734 = vmax.f32 %v730, 0.0
        %v735 = vmax.f32 %v731, 0.0
        %v736 = vmax.f32 %v732, 0.0
        %737 = vst [vmem:[%s240] sm:$0xff] %v733
        %738 = vst [vmem:[%s240 + $0x8] sm:$0xff] %v734
        %739 = vst [vmem:[%s240 + $0x10] sm:$0xff] %v735
        %740 = vst [vmem:[%s240 + $0x18] sm:$0xff] %v736
        %s741 = sand.u32 %s140, 1
        %s742 = scalar_lea.sflag [#allocation6], %s741
        %s743 = sand.u32 %s140, 1
        %s744 = smul.addr %s743, 32
        %s745 = scalar_lea.vmem [#allocation7], %s744
        // Predicated region
        $region45: #{tpu_custom_call.1} parent=39 // pred_check
          %p746 = pneg %p150
        $region46: #{tpu_custom_call.1} parent=39 // pred_check_branch
          %748 = sbr.rel (%p746) target = $region48
        $region47: #{tpu_custom_call.1} parent=39 // pred_region
          %s749 = smul.u32 4, %s22
          %s751 = ssub.s32 512, 512
          %752 = vsyncadd %s742, %s751
          %s753 = smul.addr %s749, 128
          %s754 = scalar_lea.hbm %s5, %s753
          %s756 = sshll.u32 %s745, 4
          %s757 = int_to_ptr.vmem [resolvable:$true] %s756
          %759 = dma.vmem_to_hbm [thread:$0]  %s757, 512, %s754, %s742
        $region48: #{tpu_custom_call.1} parent=39 // pred_fallthru
          _
      $region40: #{tpu_custom_call.1} parent=5 // pred_fallthru
        _
      %p760 = scmp.le.s32.totalorder 2, %s17
      // Predicated region
      $region49: #{tpu_custom_call.1} parent=5 // pred_check
        %p761 = pneg %p760
      $region50: #{tpu_custom_call.1} parent=5 // pred_check_branch
        %763 = sbr.rel (%p761) target = $region52
      $region51: #{tpu_custom_call.1} parent=5 // pred_region
        %s764 = ssub.s32 %s17, 2
        // Predicated region
        $region53: #{tpu_custom_call.1} parent=51 // pred_check
          %p765 = pneg %p156
        $region54: #{tpu_custom_call.1} parent=51 // pred_check_branch
          %767 = sbr.rel (%p765) target = $region56
        $region55: #{tpu_custom_call.1} parent=51 // pred_region
          %s768 = sand.u32 %s141, 1
          %s769 = scalar_lea.sflag [#allocation6], %s768
          %s770 = sand.u32 %s141, 1
          %s771 = smul.addr %s770, 32
          %s772 = scalar_lea.vmem [#allocation7], %s771
          %773 = dma.done %s769, 512
        $region56: #{tpu_custom_call.1} parent=51 // pred_fallthru
          _
      $region52: #{tpu_custom_call.1} parent=5 // pred_fallthru
        _
    $region6: #{tpu_custom_call.1} parent=1 // loop_footer
      %s21 = sadd.s32 1, %s17
    $region7: #{tpu_custom_call.1} parent=1 // loop_footer_branch
      %16 = sbr.rel target = $region3
    $region8: #{tpu_custom_call.1} parent=1 // loop_exit
      _
    %774 = vsyncpa [#allocation5], 1
    %s775 = scalar_lea.sflag [#allocation5], 1
    %776 = vsyncpa %s775, 1
    %777 = vsyncpa [#allocation6], 1
    %s778 = scalar_lea.sflag [#allocation6], 1
    %779 = vsyncpa %s778, 1

</llo_original>
